<compile_context>
chip_gen: v6e
topology: v6e:2x2x1
jax: 0.10.0
libtpu: 0.0.40
codegen_flags: <defaults>
</compile_context>

<pallas_src>
import math
from functools import partial

import jax
import jax.numpy as jnp
from jax import lax
from jax.experimental import pallas as pl
from jax.experimental.pallas import tpu as pltpu

HID_LANES = 128                   # lane width of the fused hidden activation
LOG2PI = math.log(2.0 * math.pi)


def _round_up(x, m):
    return ((x + m - 1) // m) * m


def _ppo_fused_kernel(obs_ref, noise_ref, w1_ref, w2_ref, w3_ref,
                      vh_ref, vo_ref, out_ref, *, action_size):
    """One batch-tile of the fused actor+critic forward.

    obs_ref  : (TB, S_pad) f32
    noise_ref: (TB, OUT)   f32, lanes [0:A) = N(0,1) draw, rest 0
    w1_ref   : (S_pad, 128) bf16  fused [aw1 | cw1]
    w2_ref   : (128, 128)  bf16  block-diag [aw2, cw2]
    w3_ref   : (128, OUT)  bf16  aw3 -> lanes 0:A, cw3 -> lane A
    vh_ref   : (8, 128)    f32   row 0 = b1, row 1 = b2
    vo_ref   : (8, OUT)    f32   row 0 = b3, 1 = softplus(std), 2 = logp_const, 3 = entropy
    out_ref  : (TB, OUT)   f32   lanes [0:A)=action, A=value, A+1=log_prob, A+2=entropy
    """
    A = action_size
    OUT = out_ref.shape[1]

    x = obs_ref[...].astype(jnp.bfloat16)              # cast only at MXU boundary
    noise = noise_ref[...]                             # f32, zero at lanes >= A

    b1 = vh_ref[0:1, :]                                # (1, 128)
    b2 = vh_ref[1:2, :]
    b3 = vo_ref[0:1, :]                                # (1, OUT)
    sigma = vo_ref[1:2, :]                             # softplus(std), 0 at lanes >= A
    logp_c = vo_ref[2:3, :]                            # -(sum log sigma + 0.5*A*log 2pi), all lanes
    ent = vo_ref[3:4, :]                               # entropy scalar, all lanes

    # ---- fused actor+critic MLP: 3 bf16 matmuls, f32 accumulate ----
    h = jnp.maximum(
        jnp.dot(x, w1_ref[...], preferred_element_type=jnp.float32) + b1, 0.0)
    h = jnp.maximum(
        jnp.dot(h.astype(jnp.bfloat16), w2_ref[...],
                preferred_element_type=jnp.float32) + b2, 0.0)
    out3 = jnp.dot(h.astype(jnp.bfloat16), w3_ref[...],
                   preferred_element_type=jnp.float32) + b3
    # out3 lanes [0:A) = pre-tanh actor mean, lane A = value, other lanes exactly 0.

    # ---- Normal(mean, softplus(std)) with hoisted std scalars ----
    mean = jnp.tanh(out3)                              # valid at lanes < A
    action = mean + noise * sigma                      # valid at lanes < A
    noise_sq = jnp.sum(noise * noise, axis=1, keepdims=True)   # (TB, 1), exact (pad lanes are 0)
    logp = logp_c - 0.5 * noise_sq                     # (TB, OUT), same value in every lane

    # ---- single narrow lane-dense output slab ----
    lane = lax.broadcasted_iota(jnp.int32, (1, OUT), 1)
    out = jnp.where(lane < A, action, out3)            # action lanes + value at lane A
    out = jnp.where(lane == A + 1, logp, out)
    out = jnp.where(lane == A + 2, ent, out)
    out_ref[...] = out


def pack_params(params, state_size, action_size, hidden_size):
    """Pack 13 parameter arrays into resident slabs + hoisted std scalars (done once)."""
    S, A, H = state_size, action_size, hidden_size
    P = HID_LANES
    S_pad = _round_up(S, 8)
    OUT = _round_up(A + 3, 8)
    assert 2 * H <= P, "hidden too large for fused 128-lane layout"
    assert A + 1 <= OUT

    f32, bf16 = jnp.float32, jnp.bfloat16

    w1 = jnp.zeros((S_pad, P), f32)
    w1 = w1.at[0:S, 0:H].set(params["aw1"])
    w1 = w1.at[0:S, H:2 * H].set(params["cw1"])

    w2 = jnp.zeros((P, P), f32)
    w2 = w2.at[0:H, 0:H].set(params["aw2"])
    w2 = w2.at[H:2 * H, H:2 * H].set(params["cw2"])

    w3 = jnp.zeros((P, OUT), f32)
    w3 = w3.at[0:H, 0:A].set(params["aw3"])
    w3 = w3.at[H:2 * H, A:A + 1].set(params["cw3"])

    vh = jnp.zeros((8, P), f32)
    vh = vh.at[0, 0:H].set(params["ab1"][0])
    vh = vh.at[0, H:2 * H].set(params["cb1"][0])
    vh = vh.at[1, 0:H].set(params["ab2"][0])
    vh = vh.at[1, H:2 * H].set(params["cb2"][0])

    # std-only math hoisted out of the kernel (recompute when std changes).
    std = params["std"].astype(f32)                                   # (1, A)
    sigma = jnp.maximum(std, 0.0) + jnp.log1p(jnp.exp(-jnp.abs(std))) # stable softplus
    logsig_sum = jnp.sum(jnp.log(sigma))
    logp_const = -(logsig_sum + 0.5 * A * LOG2PI)
    entropy = logsig_sum + 0.5 * A * (1.0 + LOG2PI)

    vo = jnp.zeros((8, OUT), f32)
    vo = vo.at[0, 0:A].set(params["ab3"][0])
    vo = vo.at[0, A].set(params["cb3"][0, 0])
    vo = vo.at[1, 0:A].set(sigma[0])
    vo = vo.at[2, :].set(logp_const)
    vo = vo.at[3, :].set(entropy)

    return dict(w1=w1.astype(bf16), w2=w2.astype(bf16), w3=w3.astype(bf16),
                vh=vh, vo=vo, S_pad=S_pad, OUT=OUT)


def ppo_policy_forward(obs, packed, noise, *, state_size, action_size,
                       batch_tile=None):
    """Returns (action, log_prob, entropy, value) — same order as the torch module."""
    B = obs.shape[0]
    S, A = state_size, action_size
    S_pad, OUT = packed["S_pad"], packed["OUT"]

    obs_p = obs.astype(jnp.float32)
    if S_pad != S:
        obs_p = jnp.pad(obs_p, ((0, 0), (0, S_pad - S)))
    noise_p = jnp.zeros((B, OUT), jnp.float32).at[:, 0:A].set(noise.astype(jnp.float32))

    # ---- batch tile selection ----
    if batch_tile is None:
        TB = min(1024, _round_up(B, 8))
        steps = -(-B // TB)
        if steps > 1 and steps % 2 == 1:
            # v7x megacore: prefer an even step count so both TensorCores get work.
            steps += 1
            TB = max(8, _round_up(-(-B // steps), 8))
    else:
        TB = batch_tile
        assert TB % 8 == 0 and TB > 0, "batch_tile must be a positive multiple of 8"
    Bp = _round_up(B, TB)
    if Bp != B:
        obs_p = jnp.pad(obs_p, ((0, Bp - B), (0, 0)))
        noise_p = jnp.pad(noise_p, ((0, Bp - B), (0, 0)))

    out = pl.pallas_call(
        partial(_ppo_fused_kernel, action_size=A),
        out_shape=jax.ShapeDtypeStruct((Bp, OUT), jnp.float32),
        grid_spec=pltpu.PrefetchScalarGridSpec(
            num_scalar_prefetch=0,
            grid=(Bp // TB,),
            in_specs=[
                pl.BlockSpec((TB, S_pad), lambda i: (i, 0)),          # obs tile
                pl.BlockSpec((TB, OUT), lambda i: (i, 0)),            # noise tile
                pl.BlockSpec((S_pad, HID_LANES), lambda i: (0, 0)),   # w1 (resident)
                pl.BlockSpec((HID_LANES, HID_LANES), lambda i: (0, 0)),  # w2 (resident)
                pl.BlockSpec((HID_LANES, OUT), lambda i: (0, 0)),     # w3 (resident)
                pl.BlockSpec((8, HID_LANES), lambda i: (0, 0)),       # biases b1/b2
                pl.BlockSpec((8, OUT), lambda i: (0, 0)),             # b3/sigma/consts
            ],
            out_specs=pl.BlockSpec((TB, OUT), lambda i: (i, 0)),
        ),
        compiler_params=pltpu.CompilerParams(
            dimension_semantics=("parallel",)),
    )(obs_p, noise_p, packed["w1"], packed["w2"], packed["w3"],
      packed["vh"], packed["vo"])

    out = out[:B]
    action = out[:, 0:A]
    value = out[:, A:A + 1]
    log_prob = out[:, A + 1:A + 2]
    entropy = out[:, A + 2:A + 3]
    return action, log_prob, entropy, value


def init_params(key, state_size, action_size, hidden_size):
    """Deterministic init mimicking PyTorch nn.Linear defaults: U(-1/sqrt(fan_in), ...)."""
    def linear(k, fan_in, fan_out):
        kw, kb = jax.random.split(k)
        bound = 1.0 / math.sqrt(fan_in)
        w = jax.random.uniform(kw, (fan_in, fan_out), jnp.float32, -bound, bound)
        b = jax.random.uniform(kb, (1, fan_out), jnp.float32, -bound, bound)
        return w, b

    keys = jax.random.split(key, 6)
    aw1, ab1 = linear(keys[0], state_size, hidden_size)
    aw2, ab2 = linear(keys[1], hidden_size, hidden_size)
    aw3, ab3 = linear(keys[2], hidden_size, action_size)
    cw1, cb1 = linear(keys[3], state_size, hidden_size)
    cw2, cb2 = linear(keys[4], hidden_size, hidden_size)
    cw3, cb3 = linear(keys[5], hidden_size, 1)
    std = jnp.ones((1, action_size), jnp.float32)   # nn.Parameter(torch.ones(1, action_size))
    return dict(aw1=aw1, ab1=ab1, aw2=aw2, ab2=ab2, aw3=aw3, ab3=ab3,
                cw1=cw1, cb1=cb1, cw2=cw2, cb2=cb2, cw3=cw3, cb3=cb3, std=std)


if __name__ == "__main__":
    B, state_size, action_size, hidden_size = 8, 16, 4, 32

    key = jax.random.PRNGKey(0)
    k_params, k_obs, k_noise = jax.random.split(key, 3)

    params = init_params(k_params, state_size, action_size, hidden_size)
    obs = jax.random.normal(k_obs, (B, state_size), jnp.float32)
    # action=None in the torch module -> dist.sample(); we pass deterministic noise.
    # TODO(synk): the `action is not None` evaluation path (external action) is not implemented.
    noise = jax.random.normal(k_noise, (B, action_size), jnp.float32)

    packed = pack_params(params, state_size, action_size, hidden_size)
    action, log_prob, entropy, value = ppo_policy_forward(
        obs, packed, noise,
        state_size=state_size, action_size=action_size)
    jax.block_until_ready((action, log_prob, entropy, value))

    # Pure-JAX reference mirroring the PyTorch module (bf16 matmul operands,
    # f32 accumulation — same precision the kernel uses).
    def ref(obs, p, noise):
        bf = jnp.bfloat16

        def mlp(x, w1, b1, w2, b2, w3, b3):
            h = jnp.maximum(jnp.dot(x.astype(bf), w1.astype(bf),
                                    preferred_element_type=jnp.float32) + b1, 0.0)
            h = jnp.maximum(jnp.dot(h.astype(bf), w2.astype(bf),
                                    preferred_element_type=jnp.float32) + b2, 0.0)
            return jnp.dot(h.astype(bf), w3.astype(bf),
                           preferred_element_type=jnp.float32) + b3

        mean = jnp.tanh(mlp(obs, p["aw1"], p["ab1"], p["aw2"], p["ab2"],
                            p["aw3"], p["ab3"]))
        v = mlp(obs, p["cw1"], p["cb1"], p["cw2"], p["cb2"], p["cw3"], p["cb3"])
        x = p["std"]
        sigma = jnp.maximum(x, 0.0) + jnp.log1p(jnp.exp(-jnp.abs(x)))   # softplus
        act = mean + noise * sigma
        lp = jnp.sum(-0.5 * ((act - mean) / sigma) ** 2 - jnp.log(sigma)
                     - 0.5 * LOG2PI, axis=1, keepdims=True)
        ent = jnp.sum(jnp.broadcast_to(0.5 + 0.5 * LOG2PI + jnp.log(sigma), act.shape),
                      axis=1, keepdims=True)
        return act, lp, ent, v

    r_act, r_lp, r_ent, r_v = ref(obs, params, noise)
    assert jnp.allclose(action, r_act, atol=1e-3, rtol=1e-3), "action mismatch"
    assert jnp.allclose(log_prob, r_lp, atol=1e-3, rtol=1e-3), "log_prob mismatch"
    assert jnp.allclose(entropy, r_ent, atol=1e-3, rtol=1e-3), "entropy mismatch"
    assert jnp.allclose(value, r_v, atol=1e-3, rtol=1e-3), "value mismatch"

    print("KERNEL_OK")
</pallas_src>

<mosaic_0001>
module attributes {stable_mosaic.version = 11 : i64} {
  func.func @_ppo_fused_kernel(%arg0: i32, %arg1: memref<8x16xf32, #tpu.memory_space<vmem>>, %arg2: memref<8x8xf32, #tpu.memory_space<vmem>>, %arg3: memref<16x128xbf16, #tpu.memory_space<vmem>>, %arg4: memref<128x128xbf16, #tpu.memory_space<vmem>>, %arg5: memref<128x8xbf16, #tpu.memory_space<vmem>>, %arg6: memref<8x128xf32, #tpu.memory_space<vmem>>, %arg7: memref<8x8xf32, #tpu.memory_space<vmem>>, %arg8: memref<8x8xf32, #tpu.memory_space<vmem>>) attributes {dimension_semantics = [#tpu.dimension_semantics<parallel>], iteration_bounds = array<i64: 1>, scalar_prefetch = 0 : i64, scratch_operands = 0 : i64, tpu.core_type = #tpu.core_type<tc>, window_params = [{transform_indices = @transform_0, window_bounds = array<i64: 8, 16>}, {transform_indices = @transform_1, window_bounds = array<i64: 8, 8>}, {pipeline_mode = #tpu.pipeline_mode<synchronous>, transform_indices = @transform_2, window_bounds = array<i64: 16, 128>}, {pipeline_mode = #tpu.pipeline_mode<synchronous>, transform_indices = @transform_3, window_bounds = array<i64: 128, 128>}, {pipeline_mode = #tpu.pipeline_mode<synchronous>, transform_indices = @transform_4, window_bounds = array<i64: 128, 8>}, {pipeline_mode = #tpu.pipeline_mode<synchronous>, transform_indices = @transform_5, window_bounds = array<i64: 8, 128>}, {pipeline_mode = #tpu.pipeline_mode<synchronous>, transform_indices = @transform_6, window_bounds = array<i64: 8, 8>}, {transform_indices = @transform_7, window_bounds = array<i64: 8, 8>}]} {
    %c0 = arith.constant 0 : index
    %c0_0 = arith.constant 0 : index
    %0 = vector.load %arg1[%c0, %c0_0] : memref<8x16xf32, #tpu.memory_space<vmem>>, vector<8x16xf32>
    %1 = arith.truncf %0 : vector<8x16xf32> to vector<8x16xbf16>
    %c0_1 = arith.constant 0 : index
    %c0_2 = arith.constant 0 : index
    %2 = vector.load %arg2[%c0_1, %c0_2] : memref<8x8xf32, #tpu.memory_space<vmem>>, vector<8x8xf32>
    %c0_3 = arith.constant 0 : index
    %c0_4 = arith.constant 0 : index
    %3 = vector.load %arg6[%c0_3, %c0_4] : memref<8x128xf32, #tpu.memory_space<vmem>>, vector<1x128xf32>
    %c1 = arith.constant 1 : index
    %c0_5 = arith.constant 0 : index
    %4 = vector.load %arg6[%c1, %c0_5] : memref<8x128xf32, #tpu.memory_space<vmem>>, vector<1x128xf32>
    %c0_6 = arith.constant 0 : index
    %c0_7 = arith.constant 0 : index
    %5 = vector.load %arg7[%c0_6, %c0_7] : memref<8x8xf32, #tpu.memory_space<vmem>>, vector<1x8xf32>
    %c1_8 = arith.constant 1 : index
    %c0_9 = arith.constant 0 : index
    %6 = vector.load %arg7[%c1_8, %c0_9] : memref<8x8xf32, #tpu.memory_space<vmem>>, vector<1x8xf32>
    %c2 = arith.constant 2 : index
    %c0_10 = arith.constant 0 : index
    %7 = vector.load %arg7[%c2, %c0_10] : memref<8x8xf32, #tpu.memory_space<vmem>>, vector<1x8xf32>
    %c3 = arith.constant 3 : index
    %c0_11 = arith.constant 0 : index
    %8 = vector.load %arg7[%c3, %c0_11] : memref<8x8xf32, #tpu.memory_space<vmem>>, vector<1x8xf32>
    %c0_12 = arith.constant 0 : index
    %c0_13 = arith.constant 0 : index
    %9 = vector.load %arg3[%c0_12, %c0_13] : memref<16x128xbf16, #tpu.memory_space<vmem>>, vector<16x128xbf16>
    %cst = arith.constant dense<0.000000e+00> : vector<8x128xf32>
    %10 = tpu.matmul %1, %9, %cst {dimension_numbers = #tpu.dot_dimension_numbers<[1], [0], [0], [1], [0, 0, 1, 1], [], []>} : vector<8x16xbf16>, vector<16x128xbf16>, vector<8x128xf32> -> vector<8x128xf32>
    %11 = vector.broadcast %3 : vector<1x128xf32> to vector<8x128xf32>
    %12 = arith.addf %10, %11 : vector<8x128xf32>
    %cst_14 = arith.constant 0.000000e+00 : f32
    %13 = vector.broadcast %cst_14 : f32 to vector<8x128xf32>
    %14 = arith.maximumf %12, %13 : vector<8x128xf32>
    %15 = arith.truncf %14 : vector<8x128xf32> to vector<8x128xbf16>
    %c0_15 = arith.constant 0 : index
    %c0_16 = arith.constant 0 : index
    %16 = vector.load %arg4[%c0_15, %c0_16] : memref<128x128xbf16, #tpu.memory_space<vmem>>, vector<128x128xbf16>
    %cst_17 = arith.constant dense<0.000000e+00> : vector<8x128xf32>
    %17 = tpu.matmul %15, %16, %cst_17 {dimension_numbers = #tpu.dot_dimension_numbers<[1], [0], [0], [1], [0, 0, 1, 1], [], []>} : vector<8x128xbf16>, vector<128x128xbf16>, vector<8x128xf32> -> vector<8x128xf32>
    %18 = vector.broadcast %4 : vector<1x128xf32> to vector<8x128xf32>
    %19 = arith.addf %17, %18 : vector<8x128xf32>
    %cst_18 = arith.constant 0.000000e+00 : f32
    %20 = vector.broadcast %cst_18 : f32 to vector<8x128xf32>
    %21 = arith.maximumf %19, %20 : vector<8x128xf32>
    %22 = arith.truncf %21 : vector<8x128xf32> to vector<8x128xbf16>
    %c0_19 = arith.constant 0 : index
    %c0_20 = arith.constant 0 : index
    %23 = vector.load %arg5[%c0_19, %c0_20] : memref<128x8xbf16, #tpu.memory_space<vmem>>, vector<128x8xbf16>
    %cst_21 = arith.constant dense<0.000000e+00> : vector<8x8xf32>
    %24 = tpu.matmul %22, %23, %cst_21 {dimension_numbers = #tpu.dot_dimension_numbers<[1], [0], [0], [1], [0, 0, 1, 1], [], []>} : vector<8x128xbf16>, vector<128x8xbf16>, vector<8x8xf32> -> vector<8x8xf32>
    %25 = vector.broadcast %5 : vector<1x8xf32> to vector<8x8xf32>
    %26 = arith.addf %24, %25 : vector<8x8xf32>
    %27 = math.tanh %26 : vector<8x8xf32>
    %28 = vector.broadcast %6 : vector<1x8xf32> to vector<8x8xf32>
    %29 = arith.mulf %2, %28 : vector<8x8xf32>
    %30 = arith.addf %27, %29 : vector<8x8xf32>
    %31 = arith.mulf %2, %2 : vector<8x8xf32>
    %cst_22 = arith.constant dense<0.000000e+00> : vector<8xf32>
    %32 = vector.multi_reduction <add>, %31, %cst_22 [1] : vector<8x8xf32> to vector<8xf32>
    %33 = vector.shape_cast %32 : vector<8xf32> to vector<8x1xf32>
    %cst_23 = arith.constant 5.000000e-01 : f32
    %34 = vector.broadcast %cst_23 : f32 to vector<8x1xf32>
    %35 = arith.mulf %34, %33 : vector<8x1xf32>
    %36 = vector.broadcast %7 : vector<1x8xf32> to vector<8x8xf32>
    %37 = vector.broadcast %35 : vector<8x1xf32> to vector<8x8xf32>
    %38 = arith.subf %36, %37 : vector<8x8xf32>
    %39 = tpu.iota {dimensions = array<i32: 1>} : vector<1x8xi32>
    %c4_i32 = arith.constant 4 : i32
    %40 = vector.broadcast %c4_i32 : i32 to vector<1x8xi32>
    %41 = arith.cmpi slt, %39, %40 : vector<1x8xi32>
    %42 = vector.shape_cast %41 : vector<1x8xi1> to vector<1x8xi1>
    %43 = vector.broadcast %42 : vector<1x8xi1> to vector<8x8xi1>
    %44 = arith.select %43, %30, %26 : vector<8x8xi1>, vector<8x8xf32>
    %c5_i32 = arith.constant 5 : i32
    %45 = vector.broadcast %c5_i32 : i32 to vector<1x8xi32>
    %46 = arith.cmpi eq, %39, %45 : vector<1x8xi32>
    %47 = vector.shape_cast %46 : vector<1x8xi1> to vector<1x8xi1>
    %48 = vector.broadcast %47 : vector<1x8xi1> to vector<8x8xi1>
    %49 = arith.select %48, %38, %44 : vector<8x8xi1>, vector<8x8xf32>
    %c6_i32 = arith.constant 6 : i32
    %50 = vector.broadcast %c6_i32 : i32 to vector<1x8xi32>
    %51 = arith.cmpi eq, %39, %50 : vector<1x8xi32>
    %52 = vector.shape_cast %51 : vector<1x8xi1> to vector<1x8xi1>
    %53 = vector.broadcast %52 : vector<1x8xi1> to vector<8x8xi1>
    %54 = vector.shape_cast %8 : vector<1x8xf32> to vector<1x8xf32>
    %55 = vector.broadcast %54 : vector<1x8xf32> to vector<8x8xf32>
    %56 = arith.select %53, %55, %49 : vector<8x8xi1>, vector<8x8xf32>
    %c0_24 = arith.constant 0 : index
    %c0_25 = arith.constant 0 : index
    %57 = vector.load %arg8[%c0_24, %c0_25] : memref<8x8xf32, #tpu.memory_space<vmem>>, vector<8x8xf32>
    tpu.vector_store %arg8[%c0_24, %c0_25], %56 {strides = array<i32>} : memref<8x8xf32, #tpu.memory_space<vmem>>, vector<8x8xf32>,
    return
  }
  func.func @transform_0(%arg0: i32) -> (i32, i32) {
    %c0_i32 = arith.constant 0 : i32
    %c0_i32_0 = arith.constant 0 : i32
    return %arg0, %c0_i32 : i32, i32
  }
  func.func @transform_1(%arg0: i32) -> (i32, i32) {
    %c0_i32 = arith.constant 0 : i32
    %c0_i32_0 = arith.constant 0 : i32
    return %arg0, %c0_i32 : i32, i32
  }
  func.func @transform_2(%arg0: i32) -> (i32, i32) {
    %c0_i32 = arith.constant 0 : i32
    %c0_i32_0 = arith.constant 0 : i32
    %c0_i32_1 = arith.constant 0 : i32
    return %c0_i32, %c0_i32_0 : i32, i32
  }
  func.func @transform_3(%arg0: i32) -> (i32, i32) {
    %c0_i32 = arith.constant 0 : i32
    %c0_i32_0 = arith.constant 0 : i32
    %c0_i32_1 = arith.constant 0 : i32
    return %c0_i32, %c0_i32_0 : i32, i32
  }
  func.func @transform_4(%arg0: i32) -> (i32, i32) {
    %c0_i32 = arith.constant 0 : i32
    %c0_i32_0 = arith.constant 0 : i32
    %c0_i32_1 = arith.constant 0 : i32
    return %c0_i32, %c0_i32_0 : i32, i32
  }
  func.func @transform_5(%arg0: i32) -> (i32, i32) {
    %c0_i32 = arith.constant 0 : i32
    %c0_i32_0 = arith.constant 0 : i32
    %c0_i32_1 = arith.constant 0 : i32
    return %c0_i32, %c0_i32_0 : i32, i32
  }
  func.func @transform_6(%arg0: i32) -> (i32, i32) {
    %c0_i32 = arith.constant 0 : i32
    %c0_i32_0 = arith.constant 0 : i32
    %c0_i32_1 = arith.constant 0 : i32
    return %c0_i32, %c0_i32_0 : i32, i32
  }
  func.func @transform_7(%arg0: i32) -> (i32, i32) {
    %c0_i32 = arith.constant 0 : i32
    %c0_i32_0 = arith.constant 0 : i32
    return %arg0, %c0_i32 : i32, i32
  }
}

</mosaic_0001>

<llo_original>
// kernel: tpu_custom_call.1
$region0: #{tpu_custom_call.1}
  #allocation0 [shape = 'u32[]', space=smem, size = 0x4, offset = 0x4, fixed_abs, tag = 'smem constant byte address 0x4 - core index']
  #allocation1 [shape = 'u32[144,128]{1,0:T(1,128)}', space=vmem, size = 0x12000, scoped, tag = 'internal scratch']
  %s0 = inlined_call_operand.vmem [shape: f32[8,16], index: 0, kind: input, shape index: {}]
  %s1 = inlined_call_operand.hbm [shape: f32[8,8], index: 1, kind: input, shape index: {}]
  %s2 = inlined_call_operand.hbm [shape: bf16[16,128], index: 2, kind: input, shape index: {}]
  %s3 = inlined_call_operand.vmem [shape: bf16[128,128], index: 3, kind: input, shape index: {}]
  %s4 = inlined_call_operand.vmem [shape: bf16[128,8], index: 4, kind: input, shape index: {}]
  %s5 = inlined_call_operand.hbm [shape: f32[8,128], index: 5, kind: input, shape index: {}]
  %s6 = inlined_call_operand.hbm [shape: f32[8,8], index: 6, kind: input, shape index: {}]
  %s7 = inlined_call_operand.hbm [shape: f32[8,8], index: 7, kind: output, shape index: {}]
  %s8 = sld [smem:[#allocation0]]
  $region54: #{tpu_custom_call.1} parent=0
    _
  %s10 = ssub.s32 1, %s8
  %s11 = scalar_select 0, %s10, %s8
  $region1: #{tpu_custom_call.1} parent=0
    #allocation2 [shape = 'u8[4096]{0}', space=vmem, size = 0x1000, scoped, tag = 'input window, operand 1, single buffered']
    #allocation3 [shape = 's32[1]{0}', space=sflag, size = 0x4, scoped, tag = 'scoped memory for tpu_custom_call.1']
    #allocation4 [shape = 's32[1]{0}', space=sflag, size = 0x4, scoped, tag = 'scoped memory for tpu_custom_call.1']
    #allocation5 [shape = 'u8[4096]{0}', space=vmem, size = 0x1000, scoped, tag = 'input window, operand 2, single buffered']
    #allocation6 [shape = 's32[1]{0}', space=sflag, size = 0x4, scoped, tag = 'scoped memory for tpu_custom_call.1']
    #allocation7 [shape = 'u8[4096]{0}', space=vmem, size = 0x1000, scoped, tag = 'input window, operand 5, single buffered']
    #allocation8 [shape = 'u8[4096]{0}', space=vmem, size = 0x1000, scoped, tag = 'input window, operand 6, single buffered']
    #allocation9 [shape = 's32[1]{0}', space=sflag, size = 0x4, scoped, tag = 'scoped memory for tpu_custom_call.1']
    #allocation10 [shape = 'u8[4096]{0}', space=vmem, size = 0x1000, scoped, tag = 'output window, operand 0, single buffered']
    %12 = vsyncpa [#allocation3], 0
    %13 = vsyncpa [#allocation6], 0
    %14 = vsyncpa [#allocation9], 0
    %15 = vsyncpa [#allocation4], 0
    // Predicated region
    $region2: #{tpu_custom_call.1} parent=1 // pred_check
      _
    $region3: #{tpu_custom_call.1} parent=1 // pred_check_branch
      %17 = sbr.rel (0) target = $region5
    $region4: #{tpu_custom_call.1} parent=1 // pred_region
      _
    $region5: #{tpu_custom_call.1} parent=1 // pred_fallthru
      _
    // Predicated region
    $region6: #{tpu_custom_call.1} parent=1 // pred_check
      _
    $region7: #{tpu_custom_call.1} parent=1 // pred_check_branch
      %19 = sbr.rel (0) target = $region9
    $region8: #{tpu_custom_call.1} parent=1 // pred_region
      %s21 = ssub.s32 128, 128
      %22 = vsyncadd [#allocation3], %s21
      %s24 = sshll.u32 [#allocation2], 4
      %s25 = int_to_ptr.vmem [resolvable:$true] %s24
      %27 = dma.hbm_to_vmem [thread:$0]  %s1, 128, %s25, [#allocation3]
    $region9: #{tpu_custom_call.1} parent=1 // pred_fallthru
      _
    // Predicated region
    $region10: #{tpu_custom_call.1} parent=1 // pred_check
      _
    $region11: #{tpu_custom_call.1} parent=1 // pred_check_branch
      %29 = sbr.rel (0) target = $region13
    $region12: #{tpu_custom_call.1} parent=1 // pred_region
      %s31 = ssub.s32 128, 128
      %32 = vsyncadd [#allocation6], %s31
      %s33 = sshll.u32 [#allocation5], 4
      %s34 = int_to_ptr.vmem [resolvable:$true] %s33
      %39 = dma.hbm_to_vmem [thread:$0]  %s2, 128, %s34, [#allocation6], 64, 64, 4
    $region13: #{tpu_custom_call.1} parent=1 // pred_fallthru
      _
    // Predicated region
    $region14: #{tpu_custom_call.1} parent=1 // pred_check
      _
    $region15: #{tpu_custom_call.1} parent=1 // pred_check_branch
      %41 = sbr.rel (0) target = $region17
    $region16: #{tpu_custom_call.1} parent=1 // pred_region
      _
    $region17: #{tpu_custom_call.1} parent=1 // pred_fallthru
      _
    // Predicated region
    $region18: #{tpu_custom_call.1} parent=1 // pred_check
      _
    $region19: #{tpu_custom_call.1} parent=1 // pred_check_branch
      %43 = sbr.rel (0) target = $region21
    $region20: #{tpu_custom_call.1} parent=1 // pred_region
      _
    $region21: #{tpu_custom_call.1} parent=1 // pred_fallthru
      _
    // Predicated region
    $region22: #{tpu_custom_call.1} parent=1 // pred_check
      _
    $region23: #{tpu_custom_call.1} parent=1 // pred_check_branch
      %45 = sbr.rel (0) target = $region25
    $region24: #{tpu_custom_call.1} parent=1 // pred_region
      %s47 = ssub.s32 128, 128
      %48 = vsyncadd [#allocation6], %s47
      %s50 = sshll.u32 [#allocation7], 4
      %s51 = int_to_ptr.vmem [resolvable:$true] %s50
      %53 = dma.hbm_to_vmem [thread:$0]  %s5, 128, %s51, [#allocation6]
    $region25: #{tpu_custom_call.1} parent=1 // pred_fallthru
      _
    // Predicated region
    $region26: #{tpu_custom_call.1} parent=1 // pred_check
      _
    $region27: #{tpu_custom_call.1} parent=1 // pred_check_branch
      %55 = sbr.rel (0) target = $region29
    $region28: #{tpu_custom_call.1} parent=1 // pred_region
      %s57 = ssub.s32 128, 128
      %58 = vsyncadd [#allocation9], %s57
      %s60 = sshll.u32 [#allocation8], 4
      %s61 = int_to_ptr.vmem [resolvable:$true] %s60
      %63 = dma.hbm_to_vmem [thread:$0]  %s6, 128, %s61, [#allocation9]
    $region29: #{tpu_custom_call.1} parent=1 // pred_fallthru
      _
    // Predicated region
    $region30: #{tpu_custom_call.1} parent=1 // pred_check
      _
    $region31: #{tpu_custom_call.1} parent=1 // pred_check_branch
      %65 = sbr.rel (0) target = $region33
    $region32: #{tpu_custom_call.1} parent=1 // pred_region
      %66 = dma.done [#allocation3], 128
    $region33: #{tpu_custom_call.1} parent=1 // pred_fallthru
      _
    // Predicated region
    $region34: #{tpu_custom_call.1} parent=1 // pred_check
      _
    $region35: #{tpu_custom_call.1} parent=1 // pred_check_branch
      %68 = sbr.rel (0) target = $region37
    $region36: #{tpu_custom_call.1} parent=1 // pred_region
      %69 = dma.done [#allocation6], 128
    $region37: #{tpu_custom_call.1} parent=1 // pred_fallthru
      _
    // Predicated region
    $region38: #{tpu_custom_call.1} parent=1 // pred_check
      _
    $region39: #{tpu_custom_call.1} parent=1 // pred_check_branch
      %71 = sbr.rel (0) target = $region41
    $region40: #{tpu_custom_call.1} parent=1 // pred_region
      %72 = dma.done [#allocation6], 128
    $region41: #{tpu_custom_call.1} parent=1 // pred_fallthru
      _
    // Predicated region
    $region42: #{tpu_custom_call.1} parent=1 // pred_check
      _
    $region43: #{tpu_custom_call.1} parent=1 // pred_check_branch
      %74 = sbr.rel (0) target = $region45
    $region44: #{tpu_custom_call.1} parent=1 // pred_region
      %75 = dma.done [#allocation9], 128
    $region45: #{tpu_custom_call.1} parent=1 // pred_fallthru
      _
    %v77 = vld [vmem:[%s0] sm:$0xff]
    %v78 = vpack.c.bf16 %v77, %v77
    %v79 = vld [vmem:[#allocation2] sm:$0xff]
    %v80 = vld [vmem:[#allocation7] sm:$0x1]
    %v81 = vld [vmem:[#allocation7 + $0x1] sm:$0x1]
    %v82 = vld [vmem:[#allocation8] sm:$0x1]
    %v83 = vld [vmem:[#allocation8 + $0x1] sm:$0x1]
    %v84 = vld [vmem:[#allocation8 + $0x2] sm:$0x1]
    %v85 = vld [vmem:[#allocation8 + $0x3] sm:$0x1]
    %v86 = vld [vmem:[#allocation5] sm:$0xf]
    %v87 = vld [vmem:[#allocation5 + $0x4] sm:$0xf]
    %v88 = vlaneseq
    %v89 = vshrl.u32 %v88, 7
    %v90 = vsub.s32 0, %v89
    %v91 = vrot.slane %v80, %v90
    %v94 = vunpack.c.l.b16 %v86
    %v95 = vunpack.c.l.b16 %v87
    %v96 = vpack.c.b16 %v95, %v94
    %vm98 = vcmask 130048
    %v100 = vsel %vm98, %v78, 0
    %102 = vmatprep.subr.bf16.mxu0 0
    %103 = vmatpush1.bf16.msra.mxu0 0
    %104 = vmatprep.subr.bf16.mxu0 0
    %105 = vmatpush1.bf16.msra.mxu0 0
    %106 = vmatprep.subr.bf16.mxu0 0
    %107 = vmatpush1.bf16.msra.mxu0 0
    %108 = vmatprep.subr.bf16.mxu0 0
    %109 = vmatpush1.bf16.msra.mxu0 0
    %110 = vmatprep.subr.bf16.mxu0 0
    %111 = vmatpush1.bf16.msra.mxu0 0
    %112 = vmatprep.subr.bf16.mxu0 0
    %113 = vmatpush1.bf16.msra.mxu0 0
    %114 = vmatprep.subr.bf16.mxu0 0
    %115 = vmatpush1.bf16.msra.mxu0 0
    %116 = vmatprep.subr.bf16.mxu0 0
    %117 = vmatpush1.bf16.msra.mxu0 %v96
    %118 = vmatprep.subr.bf16.mxu0 0
    %119 = vmatpush2.bf16.msra.mxu0 0
    %120 = vmatprep.subr.bf16.mxu0 0
    %121 = vmatpush2.bf16.msra.mxu0 0
    %122 = vmatprep.subr.bf16.mxu0 0
    %123 = vmatpush2.bf16.msra.mxu0 0
    %124 = vmatprep.subr.bf16.mxu0 0
    %125 = vmatpush2.bf16.msra.mxu0 0
    %126 = vmatprep.subr.bf16.mxu0 0
    %127 = vmatpush2.bf16.msra.mxu0 0
    %128 = vmatprep.subr.bf16.mxu0 0
    %129 = vmatpush2.bf16.msra.mxu0 0
    %130 = vmatprep.subr.bf16.mxu0 0
    %131 = vmatpush2.bf16.msra.mxu0 0
    %132 = vmatprep.subr.bf16.mxu0 0
    %133 = vmatpush2.bf16.msra.mxu0 0
    %134 = vmatprep.mubr.bf16.mxu0 0
    %135 = vmatmul.mubr.bf16.gmra.mxu0 %v100
    %v136 = vpop.f32.mrf.mxu0
    %v137 = vadd.f32 %v91, %v136
    %v138 = vpop.f32.mrf.mxu0
    %v139 = vpop.f32.mrf.mxu0
    %v140 = vpop.f32.mrf.mxu0
    %141 = vdwg.mxu0
    %v142 = vmax.f32 %v137, 0.0
    %v143 = vpack.c.bf16 %v142, %v142
    %v144 = vld [vmem:[%s3] sm:$0xf]
    %v145 = vld [vmem:[%s3 + $0x4] sm:$0xf]
    %v146 = vld [vmem:[%s3 + $0x8] sm:$0xf]
    %v147 = vld [vmem:[%s3 + $0xc] sm:$0xf]
    %v148 = vld [vmem:[%s3 + $0x10] sm:$0xf]
    %v149 = vld [vmem:[%s3 + $0x14] sm:$0xf]
    %v150 = vld [vmem:[%s3 + $0x18] sm:$0xf]
    %v151 = vld [vmem:[%s3 + $0x1c] sm:$0xf]
    %v152 = vld [vmem:[%s3 + $0x20] sm:$0xf]
    %v153 = vld [vmem:[%s3 + $0x24] sm:$0xf]
    %v154 = vld [vmem:[%s3 + $0x28] sm:$0xf]
    %v155 = vld [vmem:[%s3 + $0x2c] sm:$0xf]
    %v156 = vld [vmem:[%s3 + $0x30] sm:$0xf]
    %v157 = vld [vmem:[%s3 + $0x34] sm:$0xf]
    %v158 = vld [vmem:[%s3 + $0x38] sm:$0xf]
    %v159 = vld [vmem:[%s3 + $0x3c] sm:$0xf]
    %v160 = vlaneseq
    %v161 = vshrl.u32 %v160, 7
    %v162 = vsub.s32 0, %v161
    %v163 = vrot.slane %v81, %v162
    %v180 = vunpack.c.l.b16 %v144
    %v181 = vunpack.c.l.b16 %v145
    %v182 = vunpack.c.l.b16 %v146
    %v183 = vunpack.c.l.b16 %v147
    %v184 = vunpack.c.l.b16 %v148
    %v185 = vunpack.c.l.b16 %v149
    %v186 = vunpack.c.l.b16 %v150
    %v187 = vunpack.c.l.b16 %v151
    %v188 = vunpack.c.l.b16 %v152
    %v189 = vunpack.c.l.b16 %v153
    %v190 = vunpack.c.l.b16 %v154
    %v191 = vunpack.c.l.b16 %v155
    %v192 = vunpack.c.l.b16 %v156
    %v193 = vunpack.c.l.b16 %v157
    %v194 = vunpack.c.l.b16 %v158
    %v195 = vunpack.c.l.b16 %v159
    %v196 = vpack.c.b16 %v181, %v180
    %v197 = vpack.c.b16 %v183, %v182
    %v198 = vpack.c.b16 %v185, %v184
    %v199 = vpack.c.b16 %v187, %v186
    %v200 = vpack.c.b16 %v189, %v188
    %v201 = vpack.c.b16 %v191, %v190
    %v202 = vpack.c.b16 %v193, %v192
    %v203 = vpack.c.b16 %v195, %v194
    %212 = vmatprep.subr.bf16.mxu0 0
    %213 = vmatpush1.bf16.msra.mxu0 %v203
    %214 = vmatprep.subr.bf16.mxu0 0
    %215 = vmatpush1.bf16.msra.mxu0 %v202
    %216 = vmatprep.subr.bf16.mxu0 0
    %217 = vmatpush1.bf16.msra.mxu0 %v201
    %218 = vmatprep.subr.bf16.mxu0 0
    %219 = vmatpush1.bf16.msra.mxu0 %v200
    %220 = vmatprep.subr.bf16.mxu0 0
    %221 = vmatpush1.bf16.msra.mxu0 %v199
    %222 = vmatprep.subr.bf16.mxu0 0
    %223 = vmatpush1.bf16.msra.mxu0 %v198
    %224 = vmatprep.subr.bf16.mxu0 0
    %225 = vmatpush1.bf16.msra.mxu0 %v197
    %226 = vmatprep.subr.bf16.mxu0 0
    %227 = vmatpush1.bf16.msra.mxu0 %v196
    %228 = vmatprep.subr.bf16.mxu0 0
    %229 = vmatpush2.bf16.msra.mxu0 0
    %230 = vmatprep.subr.bf16.mxu0 0
    %231 = vmatpush2.bf16.msra.mxu0 0
    %232 = vmatprep.subr.bf16.mxu0 0
    %233 = vmatpush2.bf16.msra.mxu0 0
    %234 = vmatprep.subr.bf16.mxu0 0
    %235 = vmatpush2.bf16.msra.mxu0 0
    %236 = vmatprep.subr.bf16.mxu0 0
    %237 = vmatpush2.bf16.msra.mxu0 0
    %238 = vmatprep.subr.bf16.mxu0 0
    %239 = vmatpush2.bf16.msra.mxu0 0
    %240 = vmatprep.subr.bf16.mxu0 0
    %241 = vmatpush2.bf16.msra.mxu0 0
    %242 = vmatprep.subr.bf16.mxu0 0
    %243 = vmatpush2.bf16.msra.mxu0 0
    %244 = vmatprep.mubr.bf16.mxu0 0
    %245 = vmatmul.mubr.bf16.gmra.mxu0 %v143
    %v246 = vpop.f32.mrf.mxu0
    %v247 = vadd.f32 %v163, %v246
    %v248 = vpop.f32.mrf.mxu0
    %v249 = vpop.f32.mrf.mxu0
    %v250 = vpop.f32.mrf.mxu0
    %251 = vdwg.mxu0
    %v252 = vmax.f32 %v247, 0.0
    %v253 = vpack.c.bf16 %v252, %v252
    %v254 = vld [vmem:[%s4] sm:$0xf]
    %v255 = vld [vmem:[%s4 + $0x4] sm:$0xf]
    %v256 = vld [vmem:[%s4 + $0x8] sm:$0xf]
    %v257 = vld [vmem:[%s4 + $0xc] sm:$0xf]
    %v258 = vld [vmem:[%s4 + $0x10] sm:$0xf]
    %v259 = vld [vmem:[%s4 + $0x14] sm:$0xf]
    %v260 = vld [vmem:[%s4 + $0x18] sm:$0xf]
    %v261 = vld [vmem:[%s4 + $0x1c] sm:$0xf]
    %v262 = vld [vmem:[%s4 + $0x20] sm:$0xf]
    %v263 = vld [vmem:[%s4 + $0x24] sm:$0xf]
    %v264 = vld [vmem:[%s4 + $0x28] sm:$0xf]
    %v265 = vld [vmem:[%s4 + $0x2c] sm:$0xf]
    %v266 = vld [vmem:[%s4 + $0x30] sm:$0xf]
    %v267 = vld [vmem:[%s4 + $0x34] sm:$0xf]
    %v268 = vld [vmem:[%s4 + $0x38] sm:$0xf]
    %v269 = vld [vmem:[%s4 + $0x3c] sm:$0xf]
    %v270 = vlaneseq
    %v271 = vshrl.u32 %v270, 7
    %v272 = vsub.s32 0, %v271
    %v273 = vrot.slane %v82, %v272
    %v290 = vunpack.c.l.b16 %v254
    %v291 = vunpack.c.l.b16 %v255
    %v292 = vunpack.c.l.b16 %v256
    %v293 = vunpack.c.l.b16 %v257
    %v294 = vunpack.c.l.b16 %v258
    %v295 = vunpack.c.l.b16 %v259
    %v296 = vunpack.c.l.b16 %v260
    %v297 = vunpack.c.l.b16 %v261
    %v298 = vunpack.c.l.b16 %v262
    %v299 = vunpack.c.l.b16 %v263
    %v300 = vunpack.c.l.b16 %v264
    %v301 = vunpack.c.l.b16 %v265
    %v302 = vunpack.c.l.b16 %v266
    %v303 = vunpack.c.l.b16 %v267
    %v304 = vunpack.c.l.b16 %v268
    %v305 = vunpack.c.l.b16 %v269
    %v306 = vpack.c.b16 %v291, %v290
    %v307 = vpack.c.b16 %v293, %v292
    %v308 = vpack.c.b16 %v295, %v294
    %v309 = vpack.c.b16 %v297, %v296
    %v310 = vpack.c.b16 %v299, %v298
    %v311 = vpack.c.b16 %v301, %v300
    %v312 = vpack.c.b16 %v303, %v302
    %v313 = vpack.c.b16 %v305, %v304
    %322 = vmatprep.subr.bf16.mxu0 0
    %323 = vmatpush1.bf16.msra.mxu0 %v313
    %324 = vmatprep.subr.bf16.mxu0 0
    %325 = vmatpush1.bf16.msra.mxu0 %v312
    %326 = vmatprep.subr.bf16.mxu0 0
    %327 = vmatpush1.bf16.msra.mxu0 %v311
    %328 = vmatprep.subr.bf16.mxu0 0
    %329 = vmatpush1.bf16.msra.mxu0 %v310
    %330 = vmatprep.subr.bf16.mxu0 0
    %331 = vmatpush1.bf16.msra.mxu0 %v309
    %332 = vmatprep.subr.bf16.mxu0 0
    %333 = vmatpush1.bf16.msra.mxu0 %v308
    %334 = vmatprep.subr.bf16.mxu0 0
    %335 = vmatpush1.bf16.msra.mxu0 %v307
    %336 = vmatprep.subr.bf16.mxu0 0
    %337 = vmatpush1.bf16.msra.mxu0 %v306
    %338 = vmatprep.subr.bf16.mxu0 0
    %339 = vmatpush2.bf16.msra.mxu0 0
    %340 = vmatprep.subr.bf16.mxu0 0
    %341 = vmatpush2.bf16.msra.mxu0 0
    %342 = vmatprep.subr.bf16.mxu0 0
    %343 = vmatpush2.bf16.msra.mxu0 0
    %344 = vmatprep.subr.bf16.mxu0 0
    %345 = vmatpush2.bf16.msra.mxu0 0
    %346 = vmatprep.subr.bf16.mxu0 0
    %347 = vmatpush2.bf16.msra.mxu0 0
    %348 = vmatprep.subr.bf16.mxu0 0
    %349 = vmatpush2.bf16.msra.mxu0 0
    %350 = vmatprep.subr.bf16.mxu0 0
    %351 = vmatpush2.bf16.msra.mxu0 0
    %352 = vmatprep.subr.bf16.mxu0 0
    %353 = vmatpush2.bf16.msra.mxu0 0
    %354 = vmatprep.mubr.bf16.mxu0 0
    %355 = vmatmul.mubr.bf16.gmra.mxu0 %v253
    %v356 = vpop.f32.mrf.mxu0
    %v357 = vadd.f32 %v273, %v356
    %v358 = vpop.f32.mrf.mxu0
    %v359 = vpop.f32.mrf.mxu0
    %v360 = vpop.f32.mrf.mxu0
    %361 = vdwg.mxu0
    %v362 = vtanh.pop %v357
    %v363 = vlaneseq
    %v364 = vshrl.u32 %v363, 7
    %v365 = vsub.s32 0, %v364
    %v366 = vrot.slane %v83, %v365
    %v367 = vmul.f32 %v79, %v366
    %v368 = vadd.f32 %v362, %v367
    %v369 = vmul.f32 %v79, %v79
    %vm370 = vcmask 64512
    %v371 = vsel %vm370, %v369, 0.0
    %372 = vadd.xlane.f32.xlu0 %v371
    %v373 = vpop.xlane.xlu0 %372
    %v374 = vmul.f32 %v373, 0.5
    %v375 = vlaneseq
    %v376 = vshrl.u32 %v375, 7
    %v377 = vsub.s32 0, %v376
    %v378 = vrot.slane %v84, %v377
    %v379 = vsub.f32 %v378, %v374
    %v380 = vlaneseq
    %v381 = vand.u32 %v380, 127
    %vm382 = vcmp.lt.s32.totalorder %v381, 4
    %v383 = vsel %vm382, 1, 0
    %vm384 = vcmp.eq.s32.totalorder %v383, 1
    %v385 = vsel %vm384, %v368, %v357
    %vm386 = vcmp.eq.s32.totalorder %v381, 5
    %v387 = vsel %vm386, 1, 0
    %vm388 = vcmp.eq.s32.totalorder %v387, 1
    %v389 = vsel %vm388, %v379, %v385
    %vm390 = vcmp.eq.s32.totalorder %v381, 6
    %v391 = vsel %vm390, 1, 0
    %vm392 = vcmp.eq.s32.totalorder %v391, 1
    %v393 = vlaneseq
    %v394 = vshrl.u32 %v393, 7
    %v395 = vsub.s32 0, %v394
    %v396 = vrot.slane %v85, %v395
    %v397 = vsel %vm392, %v396, %v389
    %398 = vst.msk [vmem:[#allocation10] sm:$0xff] %vm370, %v397
    // Predicated region
    $region46: #{tpu_custom_call.1} parent=1 // pred_check
      _
    $region47: #{tpu_custom_call.1} parent=1 // pred_check_branch
      %400 = sbr.rel (0) target = $region49
    $region48: #{tpu_custom_call.1} parent=1 // pred_region
      %s402 = ssub.s32 128, 128
      %403 = vsyncadd [#allocation4], %s402
      %s405 = sshll.u32 [#allocation10], 4
      %s406 = int_to_ptr.vmem [resolvable:$true] %s405
      %408 = dma.vmem_to_hbm [thread:$0]  %s406, 128, %s7, [#allocation4]
    $region49: #{tpu_custom_call.1} parent=1 // pred_fallthru
      _
    // Predicated region
    $region50: #{tpu_custom_call.1} parent=1 // pred_check
      _
    $region51: #{tpu_custom_call.1} parent=1 // pred_check_branch
      %410 = sbr.rel (0) target = $region53
    $region52: #{tpu_custom_call.1} parent=1 // pred_region
      %411 = dma.done [#allocation4], 128
    $region53: #{tpu_custom_call.1} parent=1 // pred_fallthru
      _
    %412 = vsyncpa [#allocation3], 1
    %413 = vsyncpa [#allocation6], 1
    %414 = vsyncpa [#allocation9], 1
    %415 = vsyncpa [#allocation4], 1

</llo_original>
